<compile_context>
chip_gen: v5e
topology: v5e:2x2
jax: 0.10.0
libtpu: 0.0.40
codegen_flags: <defaults>
</compile_context>

<pallas_src>
import functools
import math

import jax
import jax.numpy as jnp
from jax.experimental import pallas as pl
from jax.experimental.pallas import tpu as pltpu

# ----------------------- fixed structural configuration -----------------------
NUM_RVS = 8          # CSPN.input_size
COND_DIM = 32        # conditional input width
NN_OUT = 32          # nn_output_size (core bottleneck width)
LEAF_SIZE = 2
NUM_LEAVES = 4
NUM_SUMS = 2

LEAF_P = LEAF_SIZE * LEAF_SIZE                                   # 4
GATE_P = (LEAF_SIZE * LEAF_SIZE) * NUM_SUMS                      # 8
ROOT_P = (NUM_SUMS * NUM_SUMS) * 1                               # 4
LEAF_OFF = [l * LEAF_P for l in range(NUM_LEAVES)]               # 0,4,8,12
GATE_OFF = [NUM_LEAVES * LEAF_P + g * GATE_P for g in range(2)]  # 16,24
ROOT_OFF = NUM_LEAVES * LEAF_P + 2 * GATE_P                      # 32
P_TOTAL = ROOT_OFF + ROOT_P                                      # 36

LOG_2PI = math.log(2.0 * math.pi)

# Parameter-row permutation so the kernel reads contiguous aligned groups:
#   rows 0..7   : leaf mean component 0 for leaf dist d = 2*l + i  (orig col 2d)
#   rows 8..15  : leaf mean component 1                            (orig col 2d+1)
#   rows 16..31 : gate m, sum s, input i=0..3 contiguous
#   rows 32..35 : root weights i=0..3
PERM = ([2 * d for d in range(8)]
        + [2 * d + 1 for d in range(8)]
        + [GATE_OFF[m] + i * NUM_SUMS + s
           for m in range(2) for s in range(NUM_SUMS) for i in range(4)]
        + [ROOT_OFF + i for i in range(4)])

# x columns matching permuted leaf-mean rows 0..15 (scope of leaf dist d)
X_IDX = [2 * (d // 2) for d in range(8)] + [2 * (d // 2) + 1 for d in range(8)]


# --------------------------------- kernel -------------------------------------
def _lse4(cols):
    """Stable logsumexp over 4 lane-dense [1, BT] rows."""
    m = jnp.maximum(jnp.maximum(cols[0], cols[1]), jnp.maximum(cols[2], cols[3]))
    return m + jnp.log(jnp.exp(cols[0] - m) + jnp.exp(cols[1] - m)
                       + jnp.exp(cols[2] - m) + jnp.exp(cols[3] - m))


def cspn_kernel(xd_ref, cond_ref, w_ref, o_ref):
    # Fused ParameterNN: single MXU matmul (bias folded into the ones-row).
    # p: [P_TOTAL, BT], rows pre-permuted (see PERM).
    p = jnp.dot(w_ref[...], cond_ref[...], preferred_element_type=jnp.float32)

    xd = xd_ref[...]                                  # [16, BT]

    def row(a, r):
        return a[r:r + 1, :]

    # ---- Gaussian leaves: all 8 leaf log-pdfs in one dense [8, BT] block ----
    # (the constant -0.5*2*log(2*pi) per leaf is deferred to the root)
    d2 = (xd - p[0:16, :]) ** 2                       # [16, BT]
    L = -0.5 * (d2[0:8, :] + d2[8:16, :])             # [8, BT], row d = leaf dist d

    # ---- layer1 products: region m, index k = j*2 + i (j over leaf 2m+1) ----
    prod = []
    for m in range(2):
        d1 = [row(L, 4 * m + 0), row(L, 4 * m + 1)]   # leaf 2m
        dd = [row(L, 4 * m + 2), row(L, 4 * m + 3)]   # leaf 2m+1
        prod.append([dd[j] + d1[i] for j in range(2) for i in range(2)])

    # ---- layer2 gating (NUM_SUMS=2): log_softmax + logsumexp, logz once ----
    sums = []
    for m in range(2):
        scols = []
        for s in range(NUM_SUMS):
            base = 16 + 8 * m + 4 * s
            w = [row(p, base + i) for i in range(4)]
            logz = _lse4(w)
            scols.append(_lse4([prod[m][i] + w[i] for i in range(4)]) - logz)
        sums.append(scols)

    # ---- layer3 product of the two gated regions ----
    root_prod = [sums[1][j] + sums[0][i] for j in range(2) for i in range(2)]

    # ---- root gating (num_sums = 1) + total Gaussian normalizer ----
    w = [row(p, 32 + i) for i in range(4)]
    logz = _lse4(w)
    out = (_lse4([root_prod[i] + w[i] for i in range(4)]) - logz
           - 0.5 * NUM_RVS * LOG_2PI)
    o_ref[...] = out                                  # lane-dense [1, BT]


# --------------------------------- wrapper ------------------------------------
def _round_up(n, m):
    return ((n + m - 1) // m) * m


@functools.partial(jax.jit, static_argnames=("b_tile",))
def cspn_forward(x, cond, wc, bc, wh, bh, b_tile=1024):
    assert b_tile % 128 == 0
    B = x.shape[0]
    tile_b = min(b_tile, _round_up(B, 128))
    B_pad = _round_up(B, tile_b)

    # Fuse the two Linear layers (no nonlinearity between core and heads).
    w_fused = wc @ wh                                  # [COND_DIM, P_TOTAL]
    b_fused = bc @ wh + bh                             # [1, P_TOTAL]
    perm = jnp.asarray(PERM, dtype=jnp.int32)
    wt = w_fused.T[perm]                               # [P_TOTAL, COND_DIM]
    bt = b_fused.T[perm]                               # [P_TOTAL, 1]
    w_aug = jnp.concatenate([wt, bt], axis=1)          # [P_TOTAL, COND_DIM+1]

    # Batch-on-lanes layouts; x duplicated to match the 16 leaf-mean rows.
    xd = x[:, jnp.asarray(X_IDX, dtype=jnp.int32)].T   # [16, B]
    ones = jnp.ones((1, B), dtype=cond.dtype)
    cond_aug = jnp.concatenate([cond.T, ones], axis=0)  # [COND_DIM+1, B]

    pad = B_pad - B
    if pad:
        xd = jnp.pad(xd, ((0, 0), (0, pad)))
        cond_aug = jnp.pad(cond_aug, ((0, 0), (0, pad)))

    grid = (B_pad // tile_b,)
    out = pl.pallas_call(
        cspn_kernel,
        out_shape=jax.ShapeDtypeStruct((1, B_pad), jnp.float32),
        grid=grid,
        in_specs=[
            pl.BlockSpec((16, tile_b), lambda i: (0, i)),
            pl.BlockSpec((COND_DIM + 1, tile_b), lambda i: (0, i)),
            pl.BlockSpec((P_TOTAL, COND_DIM + 1), lambda i: (0, 0)),  # resident
        ],
        out_specs=pl.BlockSpec((1, tile_b), lambda i: (0, i)),
        compiler_params=pltpu.CompilerParams(
            dimension_semantics=("parallel",)),
    )(xd, cond_aug, w_aug)

    return out[0, :B].reshape(B, 1)


# --------------------------- pure-JAX reference --------------------------------
def cspn_reference(x, cond, wc, bc, wh, bh):
    B = x.shape[0]
    h = cond @ wc + bc
    p = h @ wh + bh
    leaves = []
    for l in range(NUM_LEAVES):
        local = x[:, 2 * l:2 * l + 2]
        means = p[:, LEAF_OFF[l]:LEAF_OFF[l] + LEAF_P].reshape(-1, LEAF_SIZE, LEAF_SIZE)
        lp = -0.5 * jnp.sum((local[:, None, :] - means) ** 2, axis=-1) \
             - 0.5 * LEAF_SIZE * LOG_2PI
        leaves.append(lp)
    prods = []
    for m in range(2):
        d1, d2 = leaves[2 * m], leaves[2 * m + 1]
        prods.append((d1[:, None, :] + d2[:, :, None]).reshape(B, -1))
    sums = []
    for m in range(2):
        raw = p[:, GATE_OFF[m]:GATE_OFF[m] + GATE_P].reshape(-1, 4, NUM_SUMS)
        w = jax.nn.log_softmax(raw, axis=1)
        child = prods[m][:, :, None] + w
        sums.append(jax.scipy.special.logsumexp(child, axis=1))
    d1, d2 = sums[0], sums[1]
    root_prod = (d1[:, None, :] + d2[:, :, None]).reshape(B, -1)
    raw = p[:, ROOT_OFF:ROOT_OFF + ROOT_P].reshape(-1, 4, 1)
    w = jax.nn.log_softmax(raw, axis=1)
    child = root_prod[:, :, None] + w
    return jax.scipy.special.logsumexp(child, axis=1)


# ----------------------------------- main --------------------------------------
if __name__ == "__main__":
    key = jax.random.PRNGKey(0)
    kx, kc, k1, k2, k3, k4 = jax.random.split(key, 6)
    B = 2

    x = jax.random.normal(kx, (B, NUM_RVS), dtype=jnp.float32)
    cond = jax.random.normal(kc, (B, COND_DIM), dtype=jnp.float32)

    wc = 0.1 * jax.random.normal(k1, (COND_DIM, NN_OUT), dtype=jnp.float32)
    bc = 0.1 * jax.random.normal(k2, (1, NN_OUT), dtype=jnp.float32)
    wh = 0.1 * jax.random.normal(k3, (NN_OUT, P_TOTAL), dtype=jnp.float32)
    bh = 0.1 * jax.random.normal(k4, (1, P_TOTAL), dtype=jnp.float32)

    out = jax.block_until_ready(cspn_forward(x, cond, wc, bc, wh, bh))
    ref = jax.block_until_ready(cspn_reference(x, cond, wc, bc, wh, bh))
    assert out.shape == (B, 1), out.shape
    assert jnp.allclose(out, ref, rtol=1e-3, atol=1e-3), (out, ref)

    # Second check: exercises batch padding + a multi-step "parallel" grid.
    B2 = 300
    kx2, kc2 = jax.random.split(kx)
    x2 = jax.random.normal(kx2, (B2, NUM_RVS), dtype=jnp.float32)
    cond2 = jax.random.normal(kc2, (B2, COND_DIM), dtype=jnp.float32)
    out2 = jax.block_until_ready(cspn_forward(x2, cond2, wc, bc, wh, bh, b_tile=128))
    ref2 = jax.block_until_ready(cspn_reference(x2, cond2, wc, bc, wh, bh))
    assert out2.shape == (B2, 1), out2.shape
    assert jnp.allclose(out2, ref2, rtol=1e-3, atol=1e-3)

    print("KERNEL_OK")
</pallas_src>

<mosaic_0001>
module attributes {stable_mosaic.version = 11 : i64} {
  func.func @cspn_kernel(%arg0: i32, %arg1: memref<16x128xf32, #tpu.memory_space<vmem>>, %arg2: memref<33x128xf32, #tpu.memory_space<vmem>>, %arg3: memref<36x33xf32, #tpu.memory_space<vmem>>, %arg4: memref<1x128xf32, #tpu.memory_space<vmem>>) attributes {dimension_semantics = [#tpu.dimension_semantics<parallel>], iteration_bounds = array<i64: 1>, scalar_prefetch = 0 : i64, scratch_operands = 0 : i64, tpu.core_type = #tpu.core_type<tc>, window_params = [{transform_indices = @transform_0, window_bounds = array<i64: 16, 128>}, {transform_indices = @transform_1, window_bounds = array<i64: 33, 128>}, {pipeline_mode = #tpu.pipeline_mode<synchronous>, transform_indices = @transform_2, window_bounds = array<i64: 36, 33>}, {transform_indices = @transform_3, window_bounds = array<i64: 1, 128>}]} {
    %c0 = arith.constant 0 : index
    %c0_0 = arith.constant 0 : index
    %0 = vector.load %arg3[%c0, %c0_0] : memref<36x33xf32, #tpu.memory_space<vmem>>, vector<36x33xf32>
    %c0_1 = arith.constant 0 : index
    %c0_2 = arith.constant 0 : index
    %1 = vector.load %arg2[%c0_1, %c0_2] : memref<33x128xf32, #tpu.memory_space<vmem>>, vector<33x128xf32>
    %cst = arith.constant dense<0.000000e+00> : vector<36x128xf32>
    %2 = tpu.matmul %0, %1, %cst {dimension_numbers = #tpu.dot_dimension_numbers<[1], [0], [0], [1], [0, 0, 1, 1], [], []>} : vector<36x33xf32>, vector<33x128xf32>, vector<36x128xf32> -> vector<36x128xf32>
    %c0_3 = arith.constant 0 : index
    %c0_4 = arith.constant 0 : index
    %3 = vector.load %arg1[%c0_3, %c0_4] : memref<16x128xf32, #tpu.memory_space<vmem>>, vector<16x128xf32>
    %4 = vector.extract_strided_slice %2 {offsets = [0, 0], sizes = [16, 128], strides = [1, 1]} : vector<36x128xf32> to vector<16x128xf32>
    %5 = arith.subf %3, %4 : vector<16x128xf32>
    %6 = arith.mulf %5, %5 : vector<16x128xf32>
    %7 = vector.extract_strided_slice %6 {offsets = [0, 0], sizes = [8, 128], strides = [1, 1]} : vector<16x128xf32> to vector<8x128xf32>
    %8 = vector.extract_strided_slice %6 {offsets = [8, 0], sizes = [8, 128], strides = [1, 1]} : vector<16x128xf32> to vector<8x128xf32>
    %9 = arith.addf %7, %8 : vector<8x128xf32>
    %cst_5 = arith.constant -5.000000e-01 : f32
    %10 = vector.broadcast %cst_5 : f32 to vector<8x128xf32>
    %11 = arith.mulf %10, %9 : vector<8x128xf32>
    %12 = vector.extract_strided_slice %11 {offsets = [0, 0], sizes = [1, 128], strides = [1, 1]} : vector<8x128xf32> to vector<1x128xf32>
    %13 = vector.extract_strided_slice %11 {offsets = [1, 0], sizes = [1, 128], strides = [1, 1]} : vector<8x128xf32> to vector<1x128xf32>
    %14 = vector.extract_strided_slice %11 {offsets = [2, 0], sizes = [1, 128], strides = [1, 1]} : vector<8x128xf32> to vector<1x128xf32>
    %15 = vector.extract_strided_slice %11 {offsets = [3, 0], sizes = [1, 128], strides = [1, 1]} : vector<8x128xf32> to vector<1x128xf32>
    %16 = arith.addf %14, %12 : vector<1x128xf32>
    %17 = arith.addf %14, %13 : vector<1x128xf32>
    %18 = arith.addf %15, %12 : vector<1x128xf32>
    %19 = arith.addf %15, %13 : vector<1x128xf32>
    %20 = vector.extract_strided_slice %11 {offsets = [4, 0], sizes = [1, 128], strides = [1, 1]} : vector<8x128xf32> to vector<1x128xf32>
    %21 = vector.extract_strided_slice %11 {offsets = [5, 0], sizes = [1, 128], strides = [1, 1]} : vector<8x128xf32> to vector<1x128xf32>
    %22 = vector.extract_strided_slice %11 {offsets = [6, 0], sizes = [1, 128], strides = [1, 1]} : vector<8x128xf32> to vector<1x128xf32>
    %23 = vector.extract_strided_slice %11 {offsets = [7, 0], sizes = [1, 128], strides = [1, 1]} : vector<8x128xf32> to vector<1x128xf32>
    %24 = arith.addf %22, %20 : vector<1x128xf32>
    %25 = arith.addf %22, %21 : vector<1x128xf32>
    %26 = arith.addf %23, %20 : vector<1x128xf32>
    %27 = arith.addf %23, %21 : vector<1x128xf32>
    %28 = vector.extract_strided_slice %2 {offsets = [16, 0], sizes = [1, 128], strides = [1, 1]} : vector<36x128xf32> to vector<1x128xf32>
    %29 = vector.extract_strided_slice %2 {offsets = [17, 0], sizes = [1, 128], strides = [1, 1]} : vector<36x128xf32> to vector<1x128xf32>
    %30 = vector.extract_strided_slice %2 {offsets = [18, 0], sizes = [1, 128], strides = [1, 1]} : vector<36x128xf32> to vector<1x128xf32>
    %31 = vector.extract_strided_slice %2 {offsets = [19, 0], sizes = [1, 128], strides = [1, 1]} : vector<36x128xf32> to vector<1x128xf32>
    %32 = arith.maximumf %28, %29 : vector<1x128xf32>
    %33 = arith.maximumf %30, %31 : vector<1x128xf32>
    %34 = arith.maximumf %32, %33 : vector<1x128xf32>
    %35 = arith.subf %28, %34 : vector<1x128xf32>
    %36 = math.exp %35 : vector<1x128xf32>
    %37 = arith.subf %29, %34 : vector<1x128xf32>
    %38 = math.exp %37 : vector<1x128xf32>
    %39 = arith.addf %36, %38 : vector<1x128xf32>
    %40 = arith.subf %30, %34 : vector<1x128xf32>
    %41 = math.exp %40 : vector<1x128xf32>
    %42 = arith.addf %39, %41 : vector<1x128xf32>
    %43 = arith.subf %31, %34 : vector<1x128xf32>
    %44 = math.exp %43 : vector<1x128xf32>
    %45 = arith.addf %42, %44 : vector<1x128xf32>
    %46 = math.log %45 : vector<1x128xf32>
    %47 = arith.addf %34, %46 : vector<1x128xf32>
    %48 = arith.addf %16, %28 : vector<1x128xf32>
    %49 = arith.addf %17, %29 : vector<1x128xf32>
    %50 = arith.addf %18, %30 : vector<1x128xf32>
    %51 = arith.addf %19, %31 : vector<1x128xf32>
    %52 = arith.maximumf %48, %49 : vector<1x128xf32>
    %53 = arith.maximumf %50, %51 : vector<1x128xf32>
    %54 = arith.maximumf %52, %53 : vector<1x128xf32>
    %55 = arith.subf %48, %54 : vector<1x128xf32>
    %56 = math.exp %55 : vector<1x128xf32>
    %57 = arith.subf %49, %54 : vector<1x128xf32>
    %58 = math.exp %57 : vector<1x128xf32>
    %59 = arith.addf %56, %58 : vector<1x128xf32>
    %60 = arith.subf %50, %54 : vector<1x128xf32>
    %61 = math.exp %60 : vector<1x128xf32>
    %62 = arith.addf %59, %61 : vector<1x128xf32>
    %63 = arith.subf %51, %54 : vector<1x128xf32>
    %64 = math.exp %63 : vector<1x128xf32>
    %65 = arith.addf %62, %64 : vector<1x128xf32>
    %66 = math.log %65 : vector<1x128xf32>
    %67 = arith.addf %54, %66 : vector<1x128xf32>
    %68 = arith.subf %67, %47 : vector<1x128xf32>
    %69 = vector.extract_strided_slice %2 {offsets = [20, 0], sizes = [1, 128], strides = [1, 1]} : vector<36x128xf32> to vector<1x128xf32>
    %70 = vector.extract_strided_slice %2 {offsets = [21, 0], sizes = [1, 128], strides = [1, 1]} : vector<36x128xf32> to vector<1x128xf32>
    %71 = vector.extract_strided_slice %2 {offsets = [22, 0], sizes = [1, 128], strides = [1, 1]} : vector<36x128xf32> to vector<1x128xf32>
    %72 = vector.extract_strided_slice %2 {offsets = [23, 0], sizes = [1, 128], strides = [1, 1]} : vector<36x128xf32> to vector<1x128xf32>
    %73 = arith.maximumf %69, %70 : vector<1x128xf32>
    %74 = arith.maximumf %71, %72 : vector<1x128xf32>
    %75 = arith.maximumf %73, %74 : vector<1x128xf32>
    %76 = arith.subf %69, %75 : vector<1x128xf32>
    %77 = math.exp %76 : vector<1x128xf32>
    %78 = arith.subf %70, %75 : vector<1x128xf32>
    %79 = math.exp %78 : vector<1x128xf32>
    %80 = arith.addf %77, %79 : vector<1x128xf32>
    %81 = arith.subf %71, %75 : vector<1x128xf32>
    %82 = math.exp %81 : vector<1x128xf32>
    %83 = arith.addf %80, %82 : vector<1x128xf32>
    %84 = arith.subf %72, %75 : vector<1x128xf32>
    %85 = math.exp %84 : vector<1x128xf32>
    %86 = arith.addf %83, %85 : vector<1x128xf32>
    %87 = math.log %86 : vector<1x128xf32>
    %88 = arith.addf %75, %87 : vector<1x128xf32>
    %89 = arith.addf %16, %69 : vector<1x128xf32>
    %90 = arith.addf %17, %70 : vector<1x128xf32>
    %91 = arith.addf %18, %71 : vector<1x128xf32>
    %92 = arith.addf %19, %72 : vector<1x128xf32>
    %93 = arith.maximumf %89, %90 : vector<1x128xf32>
    %94 = arith.maximumf %91, %92 : vector<1x128xf32>
    %95 = arith.maximumf %93, %94 : vector<1x128xf32>
    %96 = arith.subf %89, %95 : vector<1x128xf32>
    %97 = math.exp %96 : vector<1x128xf32>
    %98 = arith.subf %90, %95 : vector<1x128xf32>
    %99 = math.exp %98 : vector<1x128xf32>
    %100 = arith.addf %97, %99 : vector<1x128xf32>
    %101 = arith.subf %91, %95 : vector<1x128xf32>
    %102 = math.exp %101 : vector<1x128xf32>
    %103 = arith.addf %100, %102 : vector<1x128xf32>
    %104 = arith.subf %92, %95 : vector<1x128xf32>
    %105 = math.exp %104 : vector<1x128xf32>
    %106 = arith.addf %103, %105 : vector<1x128xf32>
    %107 = math.log %106 : vector<1x128xf32>
    %108 = arith.addf %95, %107 : vector<1x128xf32>
    %109 = arith.subf %108, %88 : vector<1x128xf32>
    %110 = vector.extract_strided_slice %2 {offsets = [24, 0], sizes = [1, 128], strides = [1, 1]} : vector<36x128xf32> to vector<1x128xf32>
    %111 = vector.extract_strided_slice %2 {offsets = [25, 0], sizes = [1, 128], strides = [1, 1]} : vector<36x128xf32> to vector<1x128xf32>
    %112 = vector.extract_strided_slice %2 {offsets = [26, 0], sizes = [1, 128], strides = [1, 1]} : vector<36x128xf32> to vector<1x128xf32>
    %113 = vector.extract_strided_slice %2 {offsets = [27, 0], sizes = [1, 128], strides = [1, 1]} : vector<36x128xf32> to vector<1x128xf32>
    %114 = arith.maximumf %110, %111 : vector<1x128xf32>
    %115 = arith.maximumf %112, %113 : vector<1x128xf32>
    %116 = arith.maximumf %114, %115 : vector<1x128xf32>
    %117 = arith.subf %110, %116 : vector<1x128xf32>
    %118 = math.exp %117 : vector<1x128xf32>
    %119 = arith.subf %111, %116 : vector<1x128xf32>
    %120 = math.exp %119 : vector<1x128xf32>
    %121 = arith.addf %118, %120 : vector<1x128xf32>
    %122 = arith.subf %112, %116 : vector<1x128xf32>
    %123 = math.exp %122 : vector<1x128xf32>
    %124 = arith.addf %121, %123 : vector<1x128xf32>
    %125 = arith.subf %113, %116 : vector<1x128xf32>
    %126 = math.exp %125 : vector<1x128xf32>
    %127 = arith.addf %124, %126 : vector<1x128xf32>
    %128 = math.log %127 : vector<1x128xf32>
    %129 = arith.addf %116, %128 : vector<1x128xf32>
    %130 = arith.addf %24, %110 : vector<1x128xf32>
    %131 = arith.addf %25, %111 : vector<1x128xf32>
    %132 = arith.addf %26, %112 : vector<1x128xf32>
    %133 = arith.addf %27, %113 : vector<1x128xf32>
    %134 = arith.maximumf %130, %131 : vector<1x128xf32>
    %135 = arith.maximumf %132, %133 : vector<1x128xf32>
    %136 = arith.maximumf %134, %135 : vector<1x128xf32>
    %137 = arith.subf %130, %136 : vector<1x128xf32>
    %138 = math.exp %137 : vector<1x128xf32>
    %139 = arith.subf %131, %136 : vector<1x128xf32>
    %140 = math.exp %139 : vector<1x128xf32>
    %141 = arith.addf %138, %140 : vector<1x128xf32>
    %142 = arith.subf %132, %136 : vector<1x128xf32>
    %143 = math.exp %142 : vector<1x128xf32>
    %144 = arith.addf %141, %143 : vector<1x128xf32>
    %145 = arith.subf %133, %136 : vector<1x128xf32>
    %146 = math.exp %145 : vector<1x128xf32>
    %147 = arith.addf %144, %146 : vector<1x128xf32>
    %148 = math.log %147 : vector<1x128xf32>
    %149 = arith.addf %136, %148 : vector<1x128xf32>
    %150 = arith.subf %149, %129 : vector<1x128xf32>
    %151 = vector.extract_strided_slice %2 {offsets = [28, 0], sizes = [1, 128], strides = [1, 1]} : vector<36x128xf32> to vector<1x128xf32>
    %152 = vector.extract_strided_slice %2 {offsets = [29, 0], sizes = [1, 128], strides = [1, 1]} : vector<36x128xf32> to vector<1x128xf32>
    %153 = vector.extract_strided_slice %2 {offsets = [30, 0], sizes = [1, 128], strides = [1, 1]} : vector<36x128xf32> to vector<1x128xf32>
    %154 = vector.extract_strided_slice %2 {offsets = [31, 0], sizes = [1, 128], strides = [1, 1]} : vector<36x128xf32> to vector<1x128xf32>
    %155 = arith.maximumf %151, %152 : vector<1x128xf32>
    %156 = arith.maximumf %153, %154 : vector<1x128xf32>
    %157 = arith.maximumf %155, %156 : vector<1x128xf32>
    %158 = arith.subf %151, %157 : vector<1x128xf32>
    %159 = math.exp %158 : vector<1x128xf32>
    %160 = arith.subf %152, %157 : vector<1x128xf32>
    %161 = math.exp %160 : vector<1x128xf32>
    %162 = arith.addf %159, %161 : vector<1x128xf32>
    %163 = arith.subf %153, %157 : vector<1x128xf32>
    %164 = math.exp %163 : vector<1x128xf32>
    %165 = arith.addf %162, %164 : vector<1x128xf32>
    %166 = arith.subf %154, %157 : vector<1x128xf32>
    %167 = math.exp %166 : vector<1x128xf32>
    %168 = arith.addf %165, %167 : vector<1x128xf32>
    %169 = math.log %168 : vector<1x128xf32>
    %170 = arith.addf %157, %169 : vector<1x128xf32>
    %171 = arith.addf %24, %151 : vector<1x128xf32>
    %172 = arith.addf %25, %152 : vector<1x128xf32>
    %173 = arith.addf %26, %153 : vector<1x128xf32>
    %174 = arith.addf %27, %154 : vector<1x128xf32>
    %175 = arith.maximumf %171, %172 : vector<1x128xf32>
    %176 = arith.maximumf %173, %174 : vector<1x128xf32>
    %177 = arith.maximumf %175, %176 : vector<1x128xf32>
    %178 = arith.subf %171, %177 : vector<1x128xf32>
    %179 = math.exp %178 : vector<1x128xf32>
    %180 = arith.subf %172, %177 : vector<1x128xf32>
    %181 = math.exp %180 : vector<1x128xf32>
    %182 = arith.addf %179, %181 : vector<1x128xf32>
    %183 = arith.subf %173, %177 : vector<1x128xf32>
    %184 = math.exp %183 : vector<1x128xf32>
    %185 = arith.addf %182, %184 : vector<1x128xf32>
    %186 = arith.subf %174, %177 : vector<1x128xf32>
    %187 = math.exp %186 : vector<1x128xf32>
    %188 = arith.addf %185, %187 : vector<1x128xf32>
    %189 = math.log %188 : vector<1x128xf32>
    %190 = arith.addf %177, %189 : vector<1x128xf32>
    %191 = arith.subf %190, %170 : vector<1x128xf32>
    %192 = arith.addf %150, %68 : vector<1x128xf32>
    %193 = arith.addf %150, %109 : vector<1x128xf32>
    %194 = arith.addf %191, %68 : vector<1x128xf32>
    %195 = arith.addf %191, %109 : vector<1x128xf32>
    %196 = vector.extract_strided_slice %2 {offsets = [32, 0], sizes = [1, 128], strides = [1, 1]} : vector<36x128xf32> to vector<1x128xf32>
    %197 = vector.extract_strided_slice %2 {offsets = [33, 0], sizes = [1, 128], strides = [1, 1]} : vector<36x128xf32> to vector<1x128xf32>
    %198 = vector.extract_strided_slice %2 {offsets = [34, 0], sizes = [1, 128], strides = [1, 1]} : vector<36x128xf32> to vector<1x128xf32>
    %199 = vector.extract_strided_slice %2 {offsets = [35, 0], sizes = [1, 128], strides = [1, 1]} : vector<36x128xf32> to vector<1x128xf32>
    %200 = arith.maximumf %196, %197 : vector<1x128xf32>
    %201 = arith.maximumf %198, %199 : vector<1x128xf32>
    %202 = arith.maximumf %200, %201 : vector<1x128xf32>
    %203 = arith.subf %196, %202 : vector<1x128xf32>
    %204 = math.exp %203 : vector<1x128xf32>
    %205 = arith.subf %197, %202 : vector<1x128xf32>
    %206 = math.exp %205 : vector<1x128xf32>
    %207 = arith.addf %204, %206 : vector<1x128xf32>
    %208 = arith.subf %198, %202 : vector<1x128xf32>
    %209 = math.exp %208 : vector<1x128xf32>
    %210 = arith.addf %207, %209 : vector<1x128xf32>
    %211 = arith.subf %199, %202 : vector<1x128xf32>
    %212 = math.exp %211 : vector<1x128xf32>
    %213 = arith.addf %210, %212 : vector<1x128xf32>
    %214 = math.log %213 : vector<1x128xf32>
    %215 = arith.addf %202, %214 : vector<1x128xf32>
    %216 = arith.addf %192, %196 : vector<1x128xf32>
    %217 = arith.addf %193, %197 : vector<1x128xf32>
    %218 = arith.addf %194, %198 : vector<1x128xf32>
    %219 = arith.addf %195, %199 : vector<1x128xf32>
    %220 = arith.maximumf %216, %217 : vector<1x128xf32>
    %221 = arith.maximumf %218, %219 : vector<1x128xf32>
    %222 = arith.maximumf %220, %221 : vector<1x128xf32>
    %223 = arith.subf %216, %222 : vector<1x128xf32>
    %224 = math.exp %223 : vector<1x128xf32>
    %225 = arith.subf %217, %222 : vector<1x128xf32>
    %226 = math.exp %225 : vector<1x128xf32>
    %227 = arith.addf %224, %226 : vector<1x128xf32>
    %228 = arith.subf %218, %222 : vector<1x128xf32>
    %229 = math.exp %228 : vector<1x128xf32>
    %230 = arith.addf %227, %229 : vector<1x128xf32>
    %231 = arith.subf %219, %222 : vector<1x128xf32>
    %232 = math.exp %231 : vector<1x128xf32>
    %233 = arith.addf %230, %232 : vector<1x128xf32>
    %234 = math.log %233 : vector<1x128xf32>
    %235 = arith.addf %222, %234 : vector<1x128xf32>
    %236 = arith.subf %235, %215 : vector<1x128xf32>
    %cst_6 = arith.constant 7.35150814 : f32
    %237 = vector.broadcast %cst_6 : f32 to vector<1x128xf32>
    %238 = arith.subf %236, %237 : vector<1x128xf32>
    %c0_7 = arith.constant 0 : index
    %c0_8 = arith.constant 0 : index
    %239 = vector.load %arg4[%c0_7, %c0_8] : memref<1x128xf32, #tpu.memory_space<vmem>>, vector<1x128xf32>
    tpu.vector_store %arg4[%c0_7, %c0_8], %238 {strides = array<i32>} : memref<1x128xf32, #tpu.memory_space<vmem>>, vector<1x128xf32>,
    return
  }
  func.func @transform_0(%arg0: i32) -> (i32, i32) {
    %c0_i32 = arith.constant 0 : i32
    %c0_i32_0 = arith.constant 0 : i32
    return %c0_i32, %arg0 : i32, i32
  }
  func.func @transform_1(%arg0: i32) -> (i32, i32) {
    %c0_i32 = arith.constant 0 : i32
    %c0_i32_0 = arith.constant 0 : i32
    return %c0_i32, %arg0 : i32, i32
  }
  func.func @transform_2(%arg0: i32) -> (i32, i32) {
    %c0_i32 = arith.constant 0 : i32
    %c0_i32_0 = arith.constant 0 : i32
    %c0_i32_1 = arith.constant 0 : i32
    return %c0_i32, %c0_i32_0 : i32, i32
  }
  func.func @transform_3(%arg0: i32) -> (i32, i32) {
    %c0_i32 = arith.constant 0 : i32
    %c0_i32_0 = arith.constant 0 : i32
    return %c0_i32, %arg0 : i32, i32
  }
}

</mosaic_0001>

<llo_original>
// kernel: cspn_forward.1
$region0: #{cspn_forward.1}
  #allocation0 [shape = 'u32[]', space=smem, size = 0x4, offset = 0x4, fixed_abs, tag = 'smem constant byte address 0x4 - core index']
  #allocation1 [shape = 'u32[72,128]{1,0:T(1,128)}', space=vmem, size = 0x9000, scoped, tag = 'internal scratch']
  %s0 = inlined_call_operand.vmem [shape: f32[16,128], index: 0, kind: input, shape index: {}]
  %s1 = inlined_call_operand.vmem [shape: f32[33,128], index: 1, kind: input, shape index: {}]
  %s2 = inlined_call_operand.vmem [shape: f32[36,33], index: 2, kind: input, shape index: {}]
  %s3 = inlined_call_operand.vmem [shape: f32[1,128], index: 3, kind: output, shape index: {}]
  %s4 = sld [smem:[#allocation0]]
  $region22: #{cspn_forward.1} parent=0
    _
  %s6 = ssub.s32 1, %s4
  %s7 = scalar_select 0, %s6, %s4
  // Predicated region
  $region2: #{cspn_forward.1} parent=0 // pred_check
    _
  $region3: #{cspn_forward.1} parent=0 // pred_check_branch
    %9 = sbr.rel (0) target = $region5
  $region4: #{cspn_forward.1} parent=0 // pred_region
    _
  $region5: #{cspn_forward.1} parent=0 // pred_fallthru
    _
  // Predicated region
  $region6: #{cspn_forward.1} parent=0 // pred_check
    _
  $region7: #{cspn_forward.1} parent=0 // pred_check_branch
    %11 = sbr.rel (0) target = $region9
  $region8: #{cspn_forward.1} parent=0 // pred_region
    _
  $region9: #{cspn_forward.1} parent=0 // pred_fallthru
    _
  // Predicated region
  $region10: #{cspn_forward.1} parent=0 // pred_check
    _
  $region11: #{cspn_forward.1} parent=0 // pred_check_branch
    %13 = sbr.rel (0) target = $region13
  $region12: #{cspn_forward.1} parent=0 // pred_region
    _
  $region13: #{cspn_forward.1} parent=0 // pred_fallthru
    _
  %v14 = vld [vmem:[%s2] sm:$0xff]
  %v15 = vld [vmem:[%s2 + $0x8] sm:$0xff]
  %v16 = vld [vmem:[%s2 + $0x10] sm:$0xff]
  %v17 = vld [vmem:[%s2 + $0x18] sm:$0xff]
  %v18 = vld [vmem:[%s2 + $0x20] sm:$0xf]
  %v19 = vld [vmem:[%s1] sm:$0xff]
  %v20 = vld [vmem:[%s1 + $0x8] sm:$0xff]
  %v21 = vld [vmem:[%s1 + $0x10] sm:$0xff]
  %v22 = vld [vmem:[%s1 + $0x18] sm:$0xff]
  %v23 = vld [vmem:[%s1 + $0x20] sm:$0x1]
  %vm24 = vcmask 269312
  %v26 = vsel %vm24, %v14, 0
  %v29 = vsel %vm24, %v15, 0
  %v32 = vsel %vm24, %v16, 0
  %v35 = vsel %vm24, %v17, 0
  %v38 = vsel %vm24, %v18, 0
  %vm40 = vcmask 1040384
  %v42 = vsel %vm40, %v23, 0
  %44 = vmatpush.msra.mxu0 0.0
  %45 = vmatpush.msra.mxu0 0.0
  %46 = vmatpush.msra.mxu0 0.0
  %47 = vmatpush.msra.mxu0 0.0
  %48 = vmatpush.msra.mxu0 0.0
  %49 = vmatpush.msra.mxu0 0.0
  %50 = vmatpush.msra.mxu0 0.0
  %51 = vmatpush.msra.mxu0 0.0
  %52 = vmatpush.msra.mxu0 0.0
  %53 = vmatpush.msra.mxu0 0.0
  %54 = vmatpush.msra.mxu0 0.0
  %55 = vmatpush.msra.mxu0 %v42
  %56 = vmatpush.msra.mxu0 %v22
  %57 = vmatpush.msra.mxu0 %v21
  %58 = vmatpush.msra.mxu0 %v20
  %59 = vmatpush.msra.mxu0 %v19
  %60 = vmatmul.f32.gmra.mxu0 %v26
  %v61 = vpop.f32.mrf.mxu0
  %v62 = vadd.f32 0.0, %v61
  %63 = vmatmul.f32.gmra.mxu0 %v29
  %v64 = vpop.f32.mrf.mxu0
  %v65 = vadd.f32 0.0, %v64
  %66 = vmatmul.f32.gmra.mxu0 %v32
  %v67 = vpop.f32.mrf.mxu0
  %v68 = vadd.f32 0.0, %v67
  %69 = vmatmul.f32.gmra.mxu0 %v35
  %v70 = vpop.f32.mrf.mxu0
  %v71 = vadd.f32 0.0, %v70
  %72 = vmatmul.f32.gmra.mxu0 %v38
  %v73 = vpop.f32.mrf.mxu0
  %v74 = vadd.f32 0.0, %v73
  %75 = vdwg.mxu0
  %v76 = vld [vmem:[%s0] sm:$0xff]
  %v77 = vld [vmem:[%s0 + $0x8] sm:$0xff]
  %v78 = vsub.f32 %v76, %v62
  %v79 = vsub.f32 %v77, %v65
  %v80 = vmul.f32 %v78, %v78
  %v81 = vmul.f32 %v79, %v79
  %v82 = vadd.f32 %v80, %v81
  %v83 = vmul.f32 %v82, -0.5
  %v85 = vrot.slane %v83, 6
  %v87 = vadd.f32 %v83, %v85
  %v88 = vrot.slane %v83, 7
  %v90 = vadd.f32 %v83, %v88
  %v91 = vrot.slane %v83, 5
  %v93 = vadd.f32 %v83, %v91
  %v95 = vrot.slane %v68, 1
  %v97 = vmax.f32 %v68, %v95
  %v99 = vrot.slane %v97, 2
  %v101 = vmax.f32 %v97, %v99
  %v102 = vsub.f32 %v68, %v101
  %v103 = vmul.f32 %v102, 1.442695
  %v104 = vpow.pop %v103
  %v106 = vrot.slane %v101, 7
  %v108 = vsub.f32 %v68, %v106
  %v109 = vmul.f32 %v108, 1.442695
  %v110 = vpow.pop %v109
  %v112 = vrot.slane %v110, 1
  %v114 = vadd.f32 %v104, %v112
  %v115 = vrot.slane %v101, 6
  %v117 = vsub.f32 %v68, %v115
  %v118 = vmul.f32 %v117, 1.442695
  %v119 = vpow.pop %v118
  %v121 = vrot.slane %v119, 2
  %v123 = vadd.f32 %v114, %v121
  %v124 = vrot.slane %v101, 5
  %v126 = vsub.f32 %v68, %v124
  %v127 = vmul.f32 %v126, 1.442695
  %v128 = vpow.pop %v127
  %v130 = vrot.slane %v128, 3
  %v132 = vadd.f32 %v123, %v130
  %v133 = vlog2.pop %v132
  %v134 = vmul.f32 %v133, 0.6931472
  %v135 = vadd.f32 %v101, %v134
  %v136 = vrot.slane %v68, 6
  %v138 = vadd.f32 %v87, %v136
  %v139 = vrot.slane %v68, 7
  %v141 = vadd.f32 %v90, %v139
  %v142 = vadd.f32 %v93, %v139
  %v143 = vadd.f32 %v87, %v68
  %v144 = vmax.f32 %v138, %v141
  %v145 = vmax.f32 %v142, %v143
  %v147 = vrot.slane %v145, 1
  %v149 = vmax.f32 %v144, %v147
  %v150 = vsub.f32 %v138, %v149
  %v151 = vmul.f32 %v150, 1.442695
  %v152 = vpow.pop %v151
  %v153 = vsub.f32 %v141, %v149
  %v154 = vmul.f32 %v153, 1.442695
  %v155 = vpow.pop %v154
  %v156 = vadd.f32 %v152, %v155
  %v158 = vrot.slane %v149, 7
  %v160 = vsub.f32 %v142, %v158
  %v161 = vmul.f32 %v160, 1.442695
  %v162 = vpow.pop %v161
  %v164 = vrot.slane %v162, 1
  %v166 = vadd.f32 %v156, %v164
  %v167 = vsub.f32 %v143, %v158
  %v168 = vmul.f32 %v167, 1.442695
  %v169 = vpow.pop %v168
  %v171 = vrot.slane %v169, 1
  %v173 = vadd.f32 %v166, %v171
  %v174 = vlog2.pop %v173
  %v175 = vmul.f32 %v174, 0.6931472
  %v176 = vadd.f32 %v149, %v175
  %v178 = vrot.slane %v135, 6
  %v180 = vsub.f32 %v176, %v178
  %v181 = vrot.slane %v68, 2
  %v183 = vadd.f32 %v87, %v181
  %v184 = vrot.slane %v68, 3
  %v186 = vadd.f32 %v90, %v184
  %v187 = vadd.f32 %v93, %v184
  %v188 = vrot.slane %v68, 4
  %v190 = vadd.f32 %v87, %v188
  %v191 = vmax.f32 %v183, %v186
  %v192 = vmax.f32 %v187, %v190
  %v194 = vrot.slane %v192, 1
  %v196 = vmax.f32 %v191, %v194
  %v197 = vsub.f32 %v183, %v196
  %v198 = vmul.f32 %v197, 1.442695
  %v199 = vpow.pop %v198
  %v200 = vsub.f32 %v186, %v196
  %v201 = vmul.f32 %v200, 1.442695
  %v202 = vpow.pop %v201
  %v203 = vadd.f32 %v199, %v202
  %v205 = vrot.slane %v196, 7
  %v207 = vsub.f32 %v187, %v205
  %v208 = vmul.f32 %v207, 1.442695
  %v209 = vpow.pop %v208
  %v211 = vrot.slane %v209, 1
  %v213 = vadd.f32 %v203, %v211
  %v214 = vsub.f32 %v190, %v205
  %v215 = vmul.f32 %v214, 1.442695
  %v216 = vpow.pop %v215
  %v218 = vrot.slane %v216, 1
  %v220 = vadd.f32 %v213, %v218
  %v221 = vlog2.pop %v220
  %v222 = vmul.f32 %v221, 0.6931472
  %v223 = vadd.f32 %v196, %v222
  %v224 = vrot.slane %v135, 2
  %v226 = vsub.f32 %v223, %v224
  %v228 = vrot.slane %v71, 1
  %v230 = vmax.f32 %v71, %v228
  %v232 = vrot.slane %v230, 2
  %v234 = vmax.f32 %v230, %v232
  %v235 = vsub.f32 %v71, %v234
  %v236 = vmul.f32 %v235, 1.442695
  %v237 = vpow.pop %v236
  %v239 = vrot.slane %v234, 7
  %v241 = vsub.f32 %v71, %v239
  %v242 = vmul.f32 %v241, 1.442695
  %v243 = vpow.pop %v242
  %v245 = vrot.slane %v243, 1
  %v247 = vadd.f32 %v237, %v245
  %v248 = vrot.slane %v234, 6
  %v250 = vsub.f32 %v71, %v248
  %v251 = vmul.f32 %v250, 1.442695
  %v252 = vpow.pop %v251
  %v254 = vrot.slane %v252, 2
  %v256 = vadd.f32 %v247, %v254
  %v257 = vrot.slane %v234, 5
  %v259 = vsub.f32 %v71, %v257
  %v260 = vmul.f32 %v259, 1.442695
  %v261 = vpow.pop %v260
  %v263 = vrot.slane %v261, 3
  %v265 = vadd.f32 %v256, %v263
  %v266 = vlog2.pop %v265
  %v267 = vmul.f32 %v266, 0.6931472
  %v268 = vadd.f32 %v234, %v267
  %v269 = vrot.slane %v71, 2
  %v271 = vadd.f32 %v87, %v269
  %v272 = vrot.slane %v71, 3
  %v274 = vadd.f32 %v90, %v272
  %v275 = vadd.f32 %v93, %v272
  %v276 = vrot.slane %v71, 4
  %v278 = vadd.f32 %v87, %v276
  %v279 = vmax.f32 %v271, %v274
  %v280 = vmax.f32 %v275, %v278
  %v282 = vrot.slane %v280, 1
  %v284 = vmax.f32 %v279, %v282
  %v285 = vsub.f32 %v271, %v284
  %v286 = vmul.f32 %v285, 1.442695
  %v287 = vpow.pop %v286
  %v288 = vsub.f32 %v274, %v284
  %v289 = vmul.f32 %v288, 1.442695
  %v290 = vpow.pop %v289
  %v291 = vadd.f32 %v287, %v290
  %v293 = vrot.slane %v284, 7
  %v295 = vsub.f32 %v275, %v293
  %v296 = vmul.f32 %v295, 1.442695
  %v297 = vpow.pop %v296
  %v299 = vrot.slane %v297, 1
  %v301 = vadd.f32 %v291, %v299
  %v302 = vsub.f32 %v278, %v293
  %v303 = vmul.f32 %v302, 1.442695
  %v304 = vpow.pop %v303
  %v306 = vrot.slane %v304, 1
  %v308 = vadd.f32 %v301, %v306
  %v309 = vlog2.pop %v308
  %v310 = vmul.f32 %v309, 0.6931472
  %v311 = vadd.f32 %v284, %v310
  %v313 = vrot.slane %v268, 2
  %v315 = vsub.f32 %v311, %v313
  %v316 = vrot.slane %v71, 6
  %v318 = vadd.f32 %v87, %v316
  %v319 = vrot.slane %v71, 7
  %v321 = vadd.f32 %v90, %v319
  %v322 = vadd.f32 %v93, %v319
  %v323 = vadd.f32 %v87, %v71
  %v324 = vmax.f32 %v318, %v321
  %v325 = vmax.f32 %v322, %v323
  %v327 = vrot.slane %v325, 1
  %v329 = vmax.f32 %v324, %v327
  %v330 = vsub.f32 %v318, %v329
  %v331 = vmul.f32 %v330, 1.442695
  %v332 = vpow.pop %v331
  %v333 = vsub.f32 %v321, %v329
  %v334 = vmul.f32 %v333, 1.442695
  %v335 = vpow.pop %v334
  %v336 = vadd.f32 %v332, %v335
  %v338 = vrot.slane %v329, 7
  %v340 = vsub.f32 %v322, %v338
  %v341 = vmul.f32 %v340, 1.442695
  %v342 = vpow.pop %v341
  %v344 = vrot.slane %v342, 1
  %v346 = vadd.f32 %v336, %v344
  %v347 = vsub.f32 %v323, %v338
  %v348 = vmul.f32 %v347, 1.442695
  %v349 = vpow.pop %v348
  %v351 = vrot.slane %v349, 1
  %v353 = vadd.f32 %v346, %v351
  %v354 = vlog2.pop %v353
  %v355 = vmul.f32 %v354, 0.6931472
  %v356 = vadd.f32 %v329, %v355
  %v357 = vrot.slane %v268, 6
  %v359 = vsub.f32 %v356, %v357
  %v361 = vrot.slane %v180, 4
  %v363 = vadd.f32 %v315, %v361
  %v365 = vrot.slane %v226, 4
  %v367 = vadd.f32 %v315, %v365
  %v368 = vadd.f32 %v359, %v361
  %v369 = vadd.f32 %v359, %v365
  %v371 = vrot.slane %v74, 1
  %v373 = vmax.f32 %v74, %v371
  %v375 = vrot.slane %v373, 2
  %v377 = vmax.f32 %v373, %v375
  %v378 = vsub.f32 %v74, %v377
  %v379 = vmul.f32 %v378, 1.442695
  %v380 = vpow.pop %v379
  %v382 = vrot.slane %v377, 7
  %v384 = vsub.f32 %v74, %v382
  %v385 = vmul.f32 %v384, 1.442695
  %v386 = vpow.pop %v385
  %v388 = vrot.slane %v386, 1
  %v390 = vadd.f32 %v380, %v388
  %v391 = vrot.slane %v377, 6
  %v393 = vsub.f32 %v74, %v391
  %v394 = vmul.f32 %v393, 1.442695
  %v395 = vpow.pop %v394
  %v397 = vrot.slane %v395, 2
  %v399 = vadd.f32 %v390, %v397
  %v400 = vrot.slane %v377, 5
  %v402 = vsub.f32 %v74, %v400
  %v403 = vmul.f32 %v402, 1.442695
  %v404 = vpow.pop %v403
  %v406 = vrot.slane %v404, 3
  %v408 = vadd.f32 %v399, %v406
  %v409 = vlog2.pop %v408
  %v410 = vmul.f32 %v409, 0.6931472
  %v411 = vadd.f32 %v377, %v410
  %v412 = vrot.slane %v74, 2
  %v414 = vadd.f32 %v363, %v412
  %v415 = vrot.slane %v74, 3
  %v417 = vadd.f32 %v367, %v415
  %v418 = vrot.slane %v74, 4
  %v420 = vadd.f32 %v368, %v418
  %v421 = vrot.slane %v74, 5
  %v423 = vadd.f32 %v369, %v421
  %v424 = vmax.f32 %v414, %v417
  %v425 = vmax.f32 %v420, %v423
  %v426 = vmax.f32 %v424, %v425
  %v427 = vsub.f32 %v414, %v426
  %v428 = vmul.f32 %v427, 1.442695
  %v429 = vpow.pop %v428
  %v430 = vsub.f32 %v417, %v426
  %v431 = vmul.f32 %v430, 1.442695
  %v432 = vpow.pop %v431
  %v433 = vadd.f32 %v429, %v432
  %v434 = vsub.f32 %v420, %v426
  %v435 = vmul.f32 %v434, 1.442695
  %v436 = vpow.pop %v435
  %v437 = vadd.f32 %v433, %v436
  %v438 = vsub.f32 %v423, %v426
  %v439 = vmul.f32 %v438, 1.442695
  %v440 = vpow.pop %v439
  %v441 = vadd.f32 %v437, %v440
  %v442 = vlog2.pop %v441
  %v443 = vmul.f32 %v442, 0.6931472
  %v444 = vadd.f32 %v426, %v443
  %v446 = vrot.slane %v411, 2
  %v448 = vsub.f32 %v444, %v446
  %v449 = vsub.f32 %v448, 7.351508
  %450 = vst [vmem:[%s3 - $0x6] sm:$0x40] %v449
  // Predicated region
  $region14: #{cspn_forward.1} parent=0 // pred_check
    _
  $region15: #{cspn_forward.1} parent=0 // pred_check_branch
    %452 = sbr.rel (0) target = $region17
  $region16: #{cspn_forward.1} parent=0 // pred_region
    _
  $region17: #{cspn_forward.1} parent=0 // pred_fallthru
    _
  // Predicated region
  $region18: #{cspn_forward.1} parent=0 // pred_check
    _
  $region19: #{cspn_forward.1} parent=0 // pred_check_branch
    %454 = sbr.rel (0) target = $region21
  $region20: #{cspn_forward.1} parent=0 // pred_region
    _
  $region21: #{cspn_forward.1} parent=0 // pred_fallthru
    _

</llo_original>
